<compile_context>
chip_gen: v7x
topology: tpu7x:2x2x1
jax: 0.10.0
libtpu: 0.0.40
codegen_flags: <defaults>
</compile_context>

<pallas_src>
import jax
import jax.numpy as jnp
from jax.experimental import pallas as pl
from jax.experimental.pallas import tpu as pltpu


def _chomp_copy_kernel(x_ref, o_ref):
    # Pure copy: the chomp is expressed in the grid / BlockSpecs, not here.
    o_ref[...] = x_ref[...]


def chomp1d(x: jax.Array, chomp_size: int) -> jax.Array:
    """Drop the last `chomp_size` elements along the final axis of (N, C, L)."""
    n, c, l = x.shape
    # Chomp1d is only ever used with chomp_size >= 1 (== conv padding); a
    # literal x[:, :, :-0] would be empty, so we exclude 0 deliberately.
    assert 0 < chomp_size < l, "chomp_size must be in (0, L)"
    l_out = l - chomp_size

    # Collapse (N, C) onto the sublane axis -> (N*C, L). Row-major contiguous,
    # so the reshapes are free; every block is a lane-dense 2-D slab.
    rows = n * c
    x2 = x.reshape(rows, l)

    itemsize = jnp.dtype(x.dtype).itemsize

    # Lane tile: multiple of 128, capped at 2048 -> common TCN lengths become
    # a single lane block (j grid axis collapses to 1).
    tl = min(2048, 128 * pl.cdiv(l_out, 128))

    # Row tile: dtype-aware sublane multiple (8 f32 / 16 bf16 / 32 int8) so
    # packed dtypes keep clean full-vreg stores, sized so one tile is ~4 MiB.
    sub = max(8, 32 // itemsize)
    target_tile_bytes = 4 * 1024 * 1024
    rows_fit = max(sub, (target_tile_bytes // (tl * itemsize)) // sub * sub)
    full_rows = sub * pl.cdiv(rows, sub)
    tr = min(rows_fit, full_rows)
    # Keep at least two row blocks when the row count allows it, so v7x's two
    # TensorCores both get work on the 'parallel' row axis.
    if full_rows >= 2 * sub and tr >= full_rows:
        tr = sub * pl.cdiv(pl.cdiv(rows, 2), sub)

    grid = (pl.cdiv(rows, tr), pl.cdiv(l_out, tl))

    tile_bytes = tr * tl * itemsize
    # Double-buffered in + out tiles, plus slack. Capped well under v7x's
    # 64 MiB physical VMEM; explicitly above v5e's 16 MiB default scoped limit.
    vmem_limit = int(min(48 << 20, max(32 << 20, 4 * tile_bytes + (2 << 20))))

    out2 = pl.pallas_call(
        _chomp_copy_kernel,
        out_shape=jax.ShapeDtypeStruct((rows, l_out), x.dtype),
        grid=grid,
        # Same block shape + index_map for input and output: block (i, j) of
        # the input covers exactly the lanes block (i, j) of the output needs,
        # so the chomped tail is (up to boundary-tile padding) never touched.
        in_specs=[pl.BlockSpec((tr, tl), lambda i, j: (i, j))],
        out_specs=pl.BlockSpec((tr, tl), lambda i, j: (i, j)),
        compiler_params=pltpu.CompilerParams(
            dimension_semantics=("parallel", "parallel"),
            vmem_limit_bytes=vmem_limit,
        ),
        cost_estimate=pl.CostEstimate(
            flops=0,
            transcendentals=0,
            bytes_accessed=2 * rows * l_out * itemsize,
        ),
    )(x2)

    return out2.reshape(n, c, l_out)


if __name__ == "__main__":
    key = jax.random.PRNGKey(0)
    k1, k2, k3 = jax.random.split(key, 3)

    # Small NCL input consistent with a TCN-style 1D sequence.
    chomp_size = 3
    x = jax.random.normal(k1, (2, 4, 16), dtype=jnp.float32)
    out = jax.block_until_ready(chomp1d(x, chomp_size))
    ref = x[:, :, :-chomp_size]
    assert out.shape == (2, 4, 16 - chomp_size), out.shape
    assert out.dtype == x.dtype
    assert jnp.array_equal(out, ref)

    # Multi-row-block grid (exercises the v7x row-split path) plus a masked
    # boundary lane tile (l_out not a multiple of 128).
    chomp_size2 = 4
    x2 = jax.random.normal(k2, (3, 8, 700), dtype=jnp.float32)
    out2 = jax.block_until_ready(chomp1d(x2, chomp_size2))
    ref2 = x2[:, :, :-chomp_size2]
    assert out2.shape == (3, 8, 700 - chomp_size2), out2.shape
    assert jnp.array_equal(out2, ref2)

    # bf16 case: exercises the dtype-aware sublane multiple (16 rows/vreg).
    chomp_size3 = 2
    x3 = jax.random.normal(k3, (2, 16, 300), dtype=jnp.bfloat16)
    out3 = jax.block_until_ready(chomp1d(x3, chomp_size3))
    ref3 = x3[:, :, :-chomp_size3]
    assert out3.shape == (2, 16, 300 - chomp_size3), out3.shape
    assert out3.dtype == jnp.bfloat16
    assert jnp.array_equal(out3, ref3)

    print("KERNEL_OK")
</pallas_src>

<mosaic_0001>
module attributes {stable_mosaic.version = 11 : i64} {
  func.func @_chomp_copy_kernel(%arg0: i32, %arg1: i32, %arg2: memref<8x128xf32, #tpu.memory_space<vmem>>, %arg3: memref<8x128xf32, #tpu.memory_space<vmem>>) attributes {dimension_semantics = [#tpu.dimension_semantics<parallel>, #tpu.dimension_semantics<parallel>], iteration_bounds = array<i64: 1, 1>, scalar_prefetch = 0 : i64, scratch_operands = 0 : i64, tpu.core_type = #tpu.core_type<tc>, window_params = [{transform_indices = @transform_0, window_bounds = array<i64: 8, 128>}, {transform_indices = @transform_1, window_bounds = array<i64: 8, 128>}]} {
    %c0 = arith.constant 0 : index
    %c0_0 = arith.constant 0 : index
    %0 = vector.load %arg2[%c0, %c0_0] : memref<8x128xf32, #tpu.memory_space<vmem>>, vector<8x128xf32>
    %c0_1 = arith.constant 0 : index
    %c0_2 = arith.constant 0 : index
    %1 = vector.load %arg3[%c0_1, %c0_2] : memref<8x128xf32, #tpu.memory_space<vmem>>, vector<8x128xf32>
    tpu.vector_store %arg3[%c0_1, %c0_2], %0 {strides = array<i32>} : memref<8x128xf32, #tpu.memory_space<vmem>>, vector<8x128xf32>,
    return
  }
  func.func @transform_0(%arg0: i32, %arg1: i32) -> (i32, i32) {
    %c0_i32 = arith.constant 0 : i32
    return %arg0, %arg1 : i32, i32
  }
  func.func @transform_1(%arg0: i32, %arg1: i32) -> (i32, i32) {
    %c0_i32 = arith.constant 0 : i32
    return %arg0, %arg1 : i32, i32
  }
}

</mosaic_0001>

<llo_original>
// kernel: tpu_custom_call.1
$region0: #{tpu_custom_call.1}
  #allocation0 [shape = 'u32[]', space=smem, size = 0x4, offset = 0x4, fixed_abs, tag = 'smem constant byte address 0x4 - core index']
  #allocation1 [shape = 'u32[144,128]{1,0:T(1,128)}', space=vmem, size = 0x12000, scoped, tag = 'internal scratch']
  %s0 = inlined_call_operand.hbm [shape: f32[8,16], index: 0, kind: input, shape index: {}]
  %s1 = inlined_call_operand.hbm [shape: f32[8,13], index: 1, kind: output, shape index: {}]
  %s2 = sld [smem:[#allocation0]]
  $region18: #{tpu_custom_call.1} parent=0
    _
  %s4 = ssub.s32 1, %s2
  %s5 = scalar_select 0, %s4, %s2
  $region1: #{tpu_custom_call.1} parent=0
    #allocation2 [shape = 'u8[4096]{0}', space=vmem, size = 0x1000, scoped, tag = 'input window, operand 0, single buffered']
    #allocation3 [shape = 's32[1]{0}', space=sflag, size = 0x4, scoped, tag = 'scoped memory for tpu_custom_call.1']
    #allocation4 [shape = 's32[1]{0}', space=sflag, size = 0x4, scoped, tag = 'scoped memory for tpu_custom_call.1']
    #allocation5 [shape = 'u8[4096]{0}', space=vmem, size = 0x1000, scoped, tag = 'output window, operand 0, single buffered']
    %6 = vsyncpa [#allocation3], 0
    %7 = vsyncpa [#allocation4], 0
    // Predicated region
    $region2: #{tpu_custom_call.1} parent=1 // pred_check
      _
    $region3: #{tpu_custom_call.1} parent=1 // pred_check_branch
      %9 = sbr.rel (0) target = $region5
    $region4: #{tpu_custom_call.1} parent=1 // pred_region
      %s11 = ssub.s32 128, 128
      %12 = vsyncadd [#allocation3], %s11
      %s14 = sshll.u32 [#allocation2], 4
      %s15 = int_to_ptr.vmem [resolvable:$true] %s14
      %17 = dma.hbm_to_vmem [thread:$0]  %s0, 128, %s15, [#allocation3]
    $region5: #{tpu_custom_call.1} parent=1 // pred_fallthru
      _
    // Predicated region
    $region6: #{tpu_custom_call.1} parent=1 // pred_check
      _
    $region7: #{tpu_custom_call.1} parent=1 // pred_check_branch
      %19 = sbr.rel (0) target = $region9
    $region8: #{tpu_custom_call.1} parent=1 // pred_region
      %20 = dma.done [#allocation3], 128
    $region9: #{tpu_custom_call.1} parent=1 // pred_fallthru
      _
    %v21 = vld [vmem:[#allocation2] sm:$0xff]
    %22 = vst [vmem:[#allocation5] sm:$0xff] %v21
    // Predicated region
    $region10: #{tpu_custom_call.1} parent=1 // pred_check
      _
    $region11: #{tpu_custom_call.1} parent=1 // pred_check_branch
      %24 = sbr.rel (0) target = $region13
    $region12: #{tpu_custom_call.1} parent=1 // pred_region
      %s26 = ssub.s32 128, 128
      %27 = vsyncadd [#allocation4], %s26
      %s29 = sshll.u32 [#allocation5], 4
      %s30 = int_to_ptr.vmem [resolvable:$true] %s29
      %32 = dma.vmem_to_hbm [thread:$0]  %s30, 128, %s1, [#allocation4]
    $region13: #{tpu_custom_call.1} parent=1 // pred_fallthru
      _
    // Predicated region
    $region14: #{tpu_custom_call.1} parent=1 // pred_check
      _
    $region15: #{tpu_custom_call.1} parent=1 // pred_check_branch
      %34 = sbr.rel (0) target = $region17
    $region16: #{tpu_custom_call.1} parent=1 // pred_region
      %35 = dma.done [#allocation4], 128
    $region17: #{tpu_custom_call.1} parent=1 // pred_fallthru
      _
    %36 = vsyncpa [#allocation3], 1
    %37 = vsyncpa [#allocation4], 1

</llo_original>
